<compile_context>
chip_gen: v6e
topology: v6e:2x2x1
jax: 0.10.0
libtpu: 0.0.40
codegen_flags: <defaults>
</compile_context>

<pallas_src>
import functools

import jax
import jax.numpy as jnp
from jax.experimental import pallas as pl
from jax.experimental.pallas import tpu as pltpu

# float32(log(1e-45)).  torch's masked_log_softmax adds log(mask + 1e-45); 1e-45 is a
# subnormal float32 that the TPU VPU flushes to zero (log(0) = -inf and a fully masked
# row would then produce NaN), so we add the pre-computed, representable value instead.
_MASKED_LOG_EPS = -103.2789306640625
_MIB = 1024 * 1024


def _attention_kernel(dec_ref, enc_ref, logmask_ref, w1t_ref, w2t_ref, vt_ref,
                      out_ref, *, chunk_b, n_chunks, tanh_dtype):
    """One batch block per grid step; chunked over batch rows inside the kernel.

    Block shapes:
      dec_ref     : (Bb, Hp)     decoder_state rows (MXU dtype)
      enc_ref     : (Bb*S, Hp)   encoder_outputs rows, batch-major flattened (MXU dtype)
      logmask_ref : (Bb, S)      precomputed log(mask) / masked-eps (float32)
      w1t_ref     : (Hp, Hp)     W1 pre-transposed to (in, out)
      w2t_ref     : (Hp, Hp)     W2 pre-transposed to (in, out)
      vt_ref      : (1, Hp)      vt weight row (float32)
      out_ref     : (Bb, S)      log-scores (float32)
    """
    S = logmask_ref.shape[-1]
    Hp = dec_ref.shape[-1]

    # Loop-invariant loads (hoisted out of the chunk loop).
    w1t = w1t_ref[...]
    w2t = w2t_ref[...]
    vt = vt_ref[...].astype(tanh_dtype)                                 # (1, Hp)

    def process(dec, enc, logmask):
        cb = dec.shape[0]
        # Plain x @ W on the MXU, f32 accumulation (operands may be bf16).
        enc_t = jnp.dot(enc, w1t, preferred_element_type=jnp.float32)   # (cb*S, Hp)
        dec_t = jnp.dot(dec, w2t, preferred_element_type=jnp.float32)   # (cb, Hp)
        h_in = enc_t.reshape(cb, S, Hp) + dec_t[:, None, :]             # (cb, S, Hp)
        # tanh is the EUP-bound part; compute it in bf16 on v6e/v7x (gated in wrapper).
        h = jnp.tanh(h_in.astype(tanh_dtype))
        # vt projection as VPU multiply + lane reduce (f32 accumulation); an N=1
        # MXU matmul would occupy the MXU pipeline at 1/256 utilization.
        ui = jnp.sum((h * vt).astype(jnp.float32), axis=-1)             # (cb, S)
        # Masked log-softmax over S (log-mask precomputed in the wrapper).
        logits = ui + logmask
        m = jnp.max(logits, axis=-1, keepdims=True)
        shifted = logits - m
        lse = jnp.log(jnp.sum(jnp.exp(shifted), axis=-1, keepdims=True))
        return (shifted - lse).astype(out_ref.dtype)

    if n_chunks == 1:
        out_ref[...] = process(dec_ref[...], enc_ref[...], logmask_ref[...])
    else:
        # Chunk over batch rows: bounds the f32 temporaries (what actually blows
        # v7x's 64 MiB VMEM) while the per-grid-step DMA tile stays large, and lets
        # MXU(chunk i+1) overlap EUP tanh(chunk i).
        def body(c, carry):
            b0 = pl.multiple_of(c * chunk_b, chunk_b)
            r0 = pl.multiple_of(c * (chunk_b * S), chunk_b * S)
            out_ref[pl.ds(b0, chunk_b), :] = process(
                dec_ref[pl.ds(b0, chunk_b), :],
                enc_ref[pl.ds(r0, chunk_b * S), :],
                logmask_ref[pl.ds(b0, chunk_b), :],
            )
            return carry

        jax.lax.fori_loop(0, n_chunks, body, 0, unroll=n_chunks <= 8)


def _tpu_generation_and_vmem():
    """Best-effort TPU generation + VMEM capacity query (safe fallbacks)."""
    gen = 0
    try:
        kind = jax.devices()[0].device_kind.lower()
        for g in (7, 6, 5, 4):
            if "v%d" % g in kind:
                gen = g
                break
    except Exception:
        pass
    vmem_cap = None
    try:
        vmem_cap = int(pltpu.get_tpu_info().vmem_capacity_bytes)
    except Exception:
        vmem_cap = None
    if vmem_cap is None or vmem_cap <= 0:
        vmem_cap = 64 * _MIB if gen >= 7 else 128 * _MIB
    return gen, vmem_cap


def _choose_tiling(B, S, Hp, in_itemsize, vmem_budget_bytes):
    """VMEM-derived (batch rows per grid step, in-kernel chunk rows, #chunks)."""
    row_tmp = 3 * S * Hp * 4                        # f32 enc_t / tanh temps per batch row
    row_io = 2 * (S * Hp * in_itemsize              # enc tile (double-buffered)
                  + Hp * in_itemsize                # dec row
                  + 2 * S * 4)                      # log-mask + output rows (f32)
    w_bytes = 2 * (2 * Hp * Hp * in_itemsize + Hp * 4)
    usable = max(vmem_budget_bytes - w_bytes, row_tmp + row_io)

    # (1) in-kernel chunk size: bound the f32 temporaries to ~4 MiB.
    tmp_budget = max(min(4 * _MIB, usable // 4), row_tmp)
    chunk_b = max(1, tmp_budget // row_tmp)
    chunk_b = min(chunk_b, B)
    if chunk_b >= 8:
        chunk_b = (chunk_b // 8) * 8
    elif chunk_b >= 4:
        chunk_b = 4
    elif chunk_b >= 2:
        chunk_b = 2

    # (2) batch rows per grid step: fill the remaining VMEM with pipelined DMA tiles,
    #     but keep >= 2 grid steps when the batch allows it (v7x has 2 TensorCores).
    n_total = -(-B // chunk_b)
    io_budget = max(usable - chunk_b * row_tmp, row_io)
    n_chunks = max(1, min(io_budget // (chunk_b * row_io), n_total))
    if n_total >= 2:
        n_chunks = max(1, min(n_chunks, (n_total + 1) // 2))
    if n_chunks < n_total and (chunk_b * n_chunks) % 8 != 0:
        # multi-step grid -> keep blocks sublane (8-row) aligned
        mult = max(1, 8 // chunk_b)
        n_chunks = -(-n_chunks // mult) * mult
    bblk = chunk_b * n_chunks
    return bblk, chunk_b, n_chunks


def attention_forward(decoder_state, encoder_outputs, mask, w1, w2, vt, *,
                      compute_dtype=None, tanh_in_bf16=None,
                      single_buffer_weights=True, vmem_limit_bytes=None):
    """Pallas forward pass of the Ptr_Network Attention module.

    decoder_state: (B, H), encoder_outputs: (B, S, H), mask: (B, S)
    w1, w2: (H, H) in PyTorch (out, in) layout; vt: (1, H).
    compute_dtype: MXU operand dtype (default bfloat16); accumulation, softmax and
      (on <v6e) tanh stay in float32.
    """
    B, S, H = encoder_outputs.shape
    assert decoder_state.shape == (B, H)
    assert mask.shape == (B, S)
    assert w1.shape == (H, H) and w2.shape == (H, H) and vt.shape == (1, H)

    gen, vmem_cap = _tpu_generation_and_vmem()

    # Generation-aware VMEM budget: v7x has 64 MiB physical, v5e/v6e have 128 MiB.
    if vmem_limit_bytes is None:
        vmem_limit_bytes = max(32 * _MIB, min(vmem_cap - 16 * _MIB, 96 * _MIB))

    # bf16 MXU operands by default (halves the dominant enc HBM stream, single-pass
    # MXU); bf16 tanh only where the VPU/EUP has bf16 (v6e / v7x).
    if compute_dtype is None:
        compute_dtype = jnp.bfloat16
    compute_dtype = jnp.dtype(compute_dtype)
    if tanh_in_bf16 is None:
        tanh_in_bf16 = (gen >= 6) and compute_dtype == jnp.dtype(jnp.bfloat16)
    tanh_dtype = jnp.bfloat16 if tanh_in_bf16 else jnp.float32

    # ---- one-time wrapper-side layout work (not repeated every grid step) ----
    f32 = jnp.float32
    # Precomputed log-mask (removes per-step EUP log + VPU select; same HBM bytes).
    log_mask = jnp.where(mask.astype(f32) > 0.0,
                         jnp.log(jnp.maximum(mask.astype(f32), 1e-30)),
                         jnp.float32(_MASKED_LOG_EPS))

    # Pad the feature dim to a lane-aligned multiple of 128.  Zero padding is exact:
    # padded W rows/cols are zero, tanh(0) = 0, and padded vt entries are zero.
    # (For very small H this trades some HBM bytes for lane-aligned tiles.)
    Hp = -(-H // 128) * 128
    ph = Hp - H
    w1t = jnp.pad(w1.T, ((0, ph), (0, ph)))          # (in, out), padded
    w2t = jnp.pad(w2.T, ((0, ph), (0, ph)))
    vtp = jnp.pad(vt, ((0, 0), (0, ph))).astype(f32)
    dec = jnp.pad(decoder_state, ((0, 0), (0, ph)))
    enc = jnp.pad(encoder_outputs, ((0, 0), (0, 0), (0, ph)))

    # VMEM-derived tile sizes (replaces the old fixed block_b=8).
    bblk, chunk_b, n_chunks = _choose_tiling(
        B, S, Hp, compute_dtype.itemsize, int(0.70 * vmem_limit_bytes))

    pad_b = (-B) % bblk
    Bp = B + pad_b
    if pad_b:
        dec = jnp.pad(dec, ((0, pad_b), (0, 0)))
        enc = jnp.pad(enc, ((0, pad_b), (0, 0), (0, 0)))
        log_mask = jnp.pad(log_mask, ((0, pad_b), (0, 0)))   # 0.0 <=> mask = 1

    # Flatten enc to (B*S, Hp) so the main matmul is a clean 2-D MXU op.
    enc2d = enc.reshape(Bp * S, Hp).astype(compute_dtype)
    dec2d = dec.astype(compute_dtype)
    w1t = w1t.astype(compute_dtype)
    w2t = w2t.astype(compute_dtype)

    kernel = functools.partial(_attention_kernel, chunk_b=chunk_b,
                               n_chunks=n_chunks, tanh_dtype=tanh_dtype)

    itemsize = compute_dtype.itemsize
    cost = pl.CostEstimate(
        flops=int(2 * Bp * S * Hp * Hp + 2 * Bp * Hp * Hp + 2 * Bp * S * Hp),
        transcendentals=int(Bp * S * Hp + Bp * S),
        bytes_accessed=int((Bp * S * Hp + Bp * Hp + 2 * Hp * Hp) * itemsize
                           + Hp * 4 + 2 * Bp * S * 4),
    )

    grid = (Bp // bblk,)

    def _run(single_buffer):
        # Grid-invariant weights: single-buffer them (their block index never changes,
        # so double-buffering only doubles weight VMEM -- matters on v7x's 64 MiB).
        wkw = dict(pipeline_mode=pl.Buffered(1)) if single_buffer else {}
        in_specs = [
            pl.BlockSpec((bblk, Hp), lambda b: (b, 0)),            # decoder_state
            pl.BlockSpec((bblk * S, Hp), lambda b: (b, 0)),        # encoder_outputs
            pl.BlockSpec((bblk, S), lambda b: (b, 0)),             # log-mask
            pl.BlockSpec((Hp, Hp), lambda b: (0, 0), **wkw),       # W1^T
            pl.BlockSpec((Hp, Hp), lambda b: (0, 0), **wkw),       # W2^T
            pl.BlockSpec((1, Hp), lambda b: (0, 0), **wkw),        # vt
        ]
        out_spec = pl.BlockSpec((bblk, S), lambda b: (b, 0))
        return pl.pallas_call(
            kernel,
            out_shape=jax.ShapeDtypeStruct((Bp, S), jnp.float32),
            grid_spec=pltpu.PrefetchScalarGridSpec(
                num_scalar_prefetch=0, grid=grid,
                in_specs=in_specs, out_specs=out_spec),
            compiler_params=pltpu.CompilerParams(
                # Batch axis is embarrassingly parallel (shards across v7x's two TCs).
                # TODO(synk): evaluate pltpu.CORE_PARALLEL on the batch axis (plain "parallel" is documented to barely change codegen).
                dimension_semantics=("parallel",),
                vmem_limit_bytes=int(vmem_limit_bytes)),
            cost_estimate=cost,
        )(dec2d, enc2d, log_mask, w1t, w2t, vtp)

    if single_buffer_weights:
        try:
            out = _run(True)
        except Exception:
            # pl.Buffered(1) unavailable on this JAX build; fall back to default.
            out = _run(False)
    else:
        out = _run(False)

    # TODO(synk): for S so large that one batch row (S*Hp) no longer fits the VMEM budget, add a trailing 'arbitrary' S-tile grid axis with an online masked log-softmax.
    return out[:B]


def attention_reference(decoder_state, encoder_outputs, mask, w1, w2, vt):
    # Pure-JAX reference mirroring the PyTorch module (same TPU-safe mask epsilon).
    enc_t = jnp.einsum("bsh,oh->bso", encoder_outputs, w1)
    dec_t = jnp.einsum("bh,oh->bo", decoder_state, w2)[:, None, :]
    ui = jnp.einsum("bsh,oh->bso", jnp.tanh(enc_t + dec_t), vt)[..., 0]
    log_mask = jnp.where(mask > 0.0,
                         jnp.log(jnp.maximum(mask, 1e-30)),
                         jnp.float32(_MASKED_LOG_EPS))
    return jax.nn.log_softmax(ui + log_mask, axis=-1)


if __name__ == "__main__":
    B, S, H = 2, 8, 32
    key = jax.random.PRNGKey(0)
    k_dec, k_enc, k_w1, k_w2, k_vt = jax.random.split(key, 5)

    decoder_state = jax.random.normal(k_dec, (B, H), dtype=jnp.float32)
    encoder_outputs = jax.random.normal(k_enc, (B, S, H), dtype=jnp.float32)

    # mask: float, with a couple of masked-out positions
    mask = jnp.ones((B, S), dtype=jnp.float32)
    mask = mask.at[0, -1].set(0.0).at[1, -2:].set(0.0)

    # deterministic parameter init (PyTorch-style uniform(-1/sqrt(H), 1/sqrt(H)))
    bound = 1.0 / (H ** 0.5)
    w1 = jax.random.uniform(k_w1, (H, H), jnp.float32, -bound, bound)
    w2 = jax.random.uniform(k_w2, (H, H), jnp.float32, -bound, bound)
    vt = jax.random.uniform(k_vt, (1, H), jnp.float32, -bound, bound)

    ref = attention_reference(decoder_state, encoder_outputs, mask, w1, w2, vt)

    # Exact-arithmetic path (f32 MXU operands) -> tight tolerance.
    out_f32 = jax.block_until_ready(attention_forward(
        decoder_state, encoder_outputs, mask, w1, w2, vt,
        compute_dtype=jnp.float32))
    assert out_f32.shape == (B, S)
    assert jnp.allclose(out_f32, ref, atol=1e-4, rtol=1e-4), (out_f32, ref)

    # Default fast path (bf16 MXU operands; bf16 tanh on v6e/v7x) -> looser tolerance.
    out_fast = jax.block_until_ready(attention_forward(
        decoder_state, encoder_outputs, mask, w1, w2, vt))
    assert out_fast.shape == (B, S)
    assert jnp.allclose(out_fast, ref, atol=6e-2, rtol=2e-2), (out_fast, ref)

    print("KERNEL_OK")
</pallas_src>

<mosaic_0001>
module attributes {stable_mosaic.version = 11 : i64} {
  func.func @_attention_kernel(%arg0: i32, %arg1: memref<2x128xf32, #tpu.memory_space<vmem>>, %arg2: memref<16x128xf32, #tpu.memory_space<vmem>>, %arg3: memref<2x8xf32, #tpu.memory_space<vmem>>, %arg4: memref<128x128xf32, #tpu.memory_space<vmem>>, %arg5: memref<128x128xf32, #tpu.memory_space<vmem>>, %arg6: memref<1x128xf32, #tpu.memory_space<vmem>>, %arg7: memref<2x8xf32, #tpu.memory_space<vmem>>) attributes {dimension_semantics = [#tpu.dimension_semantics<parallel>], iteration_bounds = array<i64: 1>, scalar_prefetch = 0 : i64, scratch_operands = 0 : i64, tpu.core_type = #tpu.core_type<tc>, window_params = [{transform_indices = @transform_0, window_bounds = array<i64: 2, 128>}, {transform_indices = @transform_1, window_bounds = array<i64: 16, 128>}, {transform_indices = @transform_2, window_bounds = array<i64: 2, 8>}, {pipeline_mode = #tpu.pipeline_mode<synchronous>, transform_indices = @transform_3, window_bounds = array<i64: 128, 128>}, {pipeline_mode = #tpu.pipeline_mode<synchronous>, transform_indices = @transform_4, window_bounds = array<i64: 128, 128>}, {pipeline_mode = #tpu.pipeline_mode<synchronous>, transform_indices = @transform_5, window_bounds = array<i64: 1, 128>}, {transform_indices = @transform_6, window_bounds = array<i64: 2, 8>}]} {
    %c0 = arith.constant 0 : index
    %c0_0 = arith.constant 0 : index
    %0 = vector.load %arg4[%c0, %c0_0] : memref<128x128xf32, #tpu.memory_space<vmem>>, vector<128x128xf32>
    %c0_1 = arith.constant 0 : index
    %c0_2 = arith.constant 0 : index
    %1 = vector.load %arg5[%c0_1, %c0_2] : memref<128x128xf32, #tpu.memory_space<vmem>>, vector<128x128xf32>
    %c0_3 = arith.constant 0 : index
    %c0_4 = arith.constant 0 : index
    %2 = vector.load %arg6[%c0_3, %c0_4] : memref<1x128xf32, #tpu.memory_space<vmem>>, vector<1x128xf32>
    %c0_5 = arith.constant 0 : index
    %c0_6 = arith.constant 0 : index
    %3 = vector.load %arg1[%c0_5, %c0_6] : memref<2x128xf32, #tpu.memory_space<vmem>>, vector<2x128xf32>
    %c0_7 = arith.constant 0 : index
    %c0_8 = arith.constant 0 : index
    %4 = vector.load %arg2[%c0_7, %c0_8] : memref<16x128xf32, #tpu.memory_space<vmem>>, vector<16x128xf32>
    %c0_9 = arith.constant 0 : index
    %c0_10 = arith.constant 0 : index
    %5 = vector.load %arg3[%c0_9, %c0_10] : memref<2x8xf32, #tpu.memory_space<vmem>>, vector<2x8xf32>
    %cst = arith.constant dense<0.000000e+00> : vector<16x128xf32>
    %6 = tpu.matmul %4, %0, %cst {dimension_numbers = #tpu.dot_dimension_numbers<[1], [0], [0], [1], [0, 0, 1, 1], [], []>} : vector<16x128xf32>, vector<128x128xf32>, vector<16x128xf32> -> vector<16x128xf32>
    %cst_11 = arith.constant dense<0.000000e+00> : vector<2x128xf32>
    %7 = tpu.matmul %3, %1, %cst_11 {dimension_numbers = #tpu.dot_dimension_numbers<[1], [0], [0], [1], [0, 0, 1, 1], [], []>} : vector<2x128xf32>, vector<128x128xf32>, vector<2x128xf32> -> vector<2x128xf32>
    %8 = vector.shape_cast %6 : vector<16x128xf32> to vector<2x8x128xf32>
    %9 = vector.shape_cast %7 : vector<2x128xf32> to vector<2x1x128xf32>
    %10 = vector.broadcast %9 : vector<2x1x128xf32> to vector<2x8x128xf32>
    %11 = arith.addf %8, %10 : vector<2x8x128xf32>
    %12 = math.tanh %11 : vector<2x8x128xf32>
    %13 = vector.shape_cast %2 : vector<1x128xf32> to vector<1x1x128xf32>
    %14 = vector.broadcast %13 : vector<1x1x128xf32> to vector<2x8x128xf32>
    %15 = arith.mulf %12, %14 : vector<2x8x128xf32>
    %cst_12 = arith.constant dense<0.000000e+00> : vector<2x8xf32>
    %16 = vector.multi_reduction <add>, %15, %cst_12 [2] : vector<2x8x128xf32> to vector<2x8xf32>
    %17 = arith.addf %16, %5 : vector<2x8xf32>
    %cst_13 = arith.constant dense<0xFF800000> : vector<2xf32>
    %18 = vector.multi_reduction <maximumf>, %17, %cst_13 [1] : vector<2x8xf32> to vector<2xf32>
    %19 = vector.shape_cast %18 : vector<2xf32> to vector<2x1xf32>
    %20 = vector.broadcast %19 : vector<2x1xf32> to vector<2x8xf32>
    %21 = arith.subf %17, %20 : vector<2x8xf32>
    %22 = math.exp %21 : vector<2x8xf32>
    %cst_14 = arith.constant dense<0.000000e+00> : vector<2xf32>
    %23 = vector.multi_reduction <add>, %22, %cst_14 [1] : vector<2x8xf32> to vector<2xf32>
    %24 = vector.shape_cast %23 : vector<2xf32> to vector<2x1xf32>
    %25 = math.log %24 : vector<2x1xf32>
    %26 = vector.broadcast %25 : vector<2x1xf32> to vector<2x8xf32>
    %27 = arith.subf %21, %26 : vector<2x8xf32>
    %c0_15 = arith.constant 0 : index
    %c0_16 = arith.constant 0 : index
    %28 = vector.load %arg7[%c0_15, %c0_16] : memref<2x8xf32, #tpu.memory_space<vmem>>, vector<2x8xf32>
    tpu.vector_store %arg7[%c0_15, %c0_16], %27 {strides = array<i32>} : memref<2x8xf32, #tpu.memory_space<vmem>>, vector<2x8xf32>,
    return
  }
  func.func @transform_0(%arg0: i32) -> (i32, i32) {
    %c0_i32 = arith.constant 0 : i32
    %c0_i32_0 = arith.constant 0 : i32
    return %arg0, %c0_i32 : i32, i32
  }
  func.func @transform_1(%arg0: i32) -> (i32, i32) {
    %c0_i32 = arith.constant 0 : i32
    %c0_i32_0 = arith.constant 0 : i32
    return %arg0, %c0_i32 : i32, i32
  }
  func.func @transform_2(%arg0: i32) -> (i32, i32) {
    %c0_i32 = arith.constant 0 : i32
    %c0_i32_0 = arith.constant 0 : i32
    return %arg0, %c0_i32 : i32, i32
  }
  func.func @transform_3(%arg0: i32) -> (i32, i32) {
    %c0_i32 = arith.constant 0 : i32
    %c0_i32_0 = arith.constant 0 : i32
    %c0_i32_1 = arith.constant 0 : i32
    return %c0_i32, %c0_i32_0 : i32, i32
  }
  func.func @transform_4(%arg0: i32) -> (i32, i32) {
    %c0_i32 = arith.constant 0 : i32
    %c0_i32_0 = arith.constant 0 : i32
    %c0_i32_1 = arith.constant 0 : i32
    return %c0_i32, %c0_i32_0 : i32, i32
  }
  func.func @transform_5(%arg0: i32) -> (i32, i32) {
    %c0_i32 = arith.constant 0 : i32
    %c0_i32_0 = arith.constant 0 : i32
    %c0_i32_1 = arith.constant 0 : i32
    return %c0_i32, %c0_i32_0 : i32, i32
  }
  func.func @transform_6(%arg0: i32) -> (i32, i32) {
    %c0_i32 = arith.constant 0 : i32
    %c0_i32_0 = arith.constant 0 : i32
    return %arg0, %c0_i32 : i32, i32
  }
}

module attributes {stable_mosaic.version = 11 : i64} {
  func.func @_attention_kernel(%arg0: i32, %arg1: memref<2x128xf32, #tpu.memory_space<vmem>>, %arg2: memref<16x128xf32, #tpu.memory_space<vmem>>, %arg3: memref<2x8xf32, #tpu.memory_space<vmem>>, %arg4: memref<128x128xf32, #tpu.memory_space<vmem>>, %arg5: memref<128x128xf32, #tpu.memory_space<vmem>>, %arg6: memref<1x128xf32, #tpu.memory_space<vmem>>, %arg7: memref<2x8xf32, #tpu.memory_space<vmem>>) attributes {dimension_semantics = [#tpu.dimension_semantics<parallel>], iteration_bounds = array<i64: 1>, scalar_prefetch = 0 : i64, scratch_operands = 0 : i64, tpu.core_type = #tpu.core_type<tc>, window_params = [{transform_indices = @transform_0, window_bounds = array<i64: 2, 128>}, {transform_indices = @transform_1, window_bounds = array<i64: 16, 128>}, {transform_indices = @transform_2, window_bounds = array<i64: 2, 8>}, {pipeline_mode = #tpu.pipeline_mode<synchronous>, transform_indices = @transform_3, window_bounds = array<i64: 128, 128>}, {pipeline_mode = #tpu.pipeline_mode<synchronous>, transform_indices = @transform_4, window_bounds = array<i64: 128, 128>}, {pipeline_mode = #tpu.pipeline_mode<synchronous>, transform_indices = @transform_5, window_bounds = array<i64: 1, 128>}, {transform_indices = @transform_6, window_bounds = array<i64: 2, 8>}]} {
    %c0 = arith.constant 0 : index
    %c0_0 = arith.constant 0 : index
    %0 = vector.load %arg4[%c0, %c0_0] : memref<128x128xf32, #tpu.memory_space<vmem>>, vector<128x128xf32>
    %c0_1 = arith.constant 0 : index
    %c0_2 = arith.constant 0 : index
    %1 = vector.load %arg5[%c0_1, %c0_2] : memref<128x128xf32, #tpu.memory_space<vmem>>, vector<128x128xf32>
    %c0_3 = arith.constant 0 : index
    %c0_4 = arith.constant 0 : index
    %2 = vector.load %arg6[%c0_3, %c0_4] : memref<1x128xf32, #tpu.memory_space<vmem>>, vector<1x128xf32>
    %c0_5 = arith.constant 0 : index
    %c0_6 = arith.constant 0 : index
    %3 = vector.load %arg1[%c0_5, %c0_6] : memref<2x128xf32, #tpu.memory_space<vmem>>, vector<2x128xf32>
    %c0_7 = arith.constant 0 : index
    %c0_8 = arith.constant 0 : index
    %4 = vector.load %arg2[%c0_7, %c0_8] : memref<16x128xf32, #tpu.memory_space<vmem>>, vector<16x128xf32>
    %c0_9 = arith.constant 0 : index
    %c0_10 = arith.constant 0 : index
    %5 = vector.load %arg3[%c0_9, %c0_10] : memref<2x8xf32, #tpu.memory_space<vmem>>, vector<2x8xf32>
    %cst = arith.constant dense<0.000000e+00> : vector<16x128xf32>
    %6 = tpu.matmul %4, %0, %cst {dimension_numbers = #tpu.dot_dimension_numbers<[1], [0], [0], [1], [0, 0, 1, 1], [], []>} : vector<16x128xf32>, vector<128x128xf32>, vector<16x128xf32> -> vector<16x128xf32>
    %cst_11 = arith.constant dense<0.000000e+00> : vector<2x128xf32>
    %7 = tpu.matmul %3, %1, %cst_11 {dimension_numbers = #tpu.dot_dimension_numbers<[1], [0], [0], [1], [0, 0, 1, 1], [], []>} : vector<2x128xf32>, vector<128x128xf32>, vector<2x128xf32> -> vector<2x128xf32>
    %8 = vector.shape_cast %6 : vector<16x128xf32> to vector<2x8x128xf32>
    %9 = vector.shape_cast %7 : vector<2x128xf32> to vector<2x1x128xf32>
    %10 = vector.broadcast %9 : vector<2x1x128xf32> to vector<2x8x128xf32>
    %11 = arith.addf %8, %10 : vector<2x8x128xf32>
    %12 = math.tanh %11 : vector<2x8x128xf32>
    %13 = vector.shape_cast %2 : vector<1x128xf32> to vector<1x1x128xf32>
    %14 = vector.broadcast %13 : vector<1x1x128xf32> to vector<2x8x128xf32>
    %15 = arith.mulf %12, %14 : vector<2x8x128xf32>
    %cst_12 = arith.constant dense<0.000000e+00> : vector<2x8xf32>
    %16 = vector.multi_reduction <add>, %15, %cst_12 [2] : vector<2x8x128xf32> to vector<2x8xf32>
    %17 = arith.addf %16, %5 : vector<2x8xf32>
    %cst_13 = arith.constant dense<0xFF800000> : vector<2xf32>
    %18 = vector.multi_reduction <maximumf>, %17, %cst_13 [1] : vector<2x8xf32> to vector<2xf32>
    %19 = vector.shape_cast %18 : vector<2xf32> to vector<2x1xf32>
    %20 = vector.broadcast %19 : vector<2x1xf32> to vector<2x8xf32>
    %21 = arith.subf %17, %20 : vector<2x8xf32>
    %22 = math.exp %21 : vector<2x8xf32>
    %cst_14 = arith.constant dense<0.000000e+00> : vector<2xf32>
    %23 = vector.multi_reduction <add>, %22, %cst_14 [1] : vector<2x8xf32> to vector<2xf32>
    %24 = vector.shape_cast %23 : vector<2xf32> to vector<2x1xf32>
    %25 = math.log %24 : vector<2x1xf32>
    %26 = vector.broadcast %25 : vector<2x1xf32> to vector<2x8xf32>
    %27 = arith.subf %21, %26 : vector<2x8xf32>
    %c0_15 = arith.constant 0 : index
    %c0_16 = arith.constant 0 : index
    %28 = vector.load %arg7[%c0_15, %c0_16] : memref<2x8xf32, #tpu.memory_space<vmem>>, vector<2x8xf32>
    tpu.vector_store %arg7[%c0_15, %c0_16], %27 {strides = array<i32>} : memref<2x8xf32, #tpu.memory_space<vmem>>, vector<2x8xf32>,
    return
  }
  func.func @transform_0(%arg0: i32) -> (i32, i32) {
    %c0_i32 = arith.constant 0 : i32
    %c0_i32_0 = arith.constant 0 : i32
    return %arg0, %c0_i32 : i32, i32
  }
  func.func @transform_1(%arg0: i32) -> (i32, i32) {
    %c0_i32 = arith.constant 0 : i32
    %c0_i32_0 = arith.constant 0 : i32
    return %arg0, %c0_i32 : i32, i32
  }
  func.func @transform_2(%arg0: i32) -> (i32, i32) {
    %c0_i32 = arith.constant 0 : i32
    %c0_i32_0 = arith.constant 0 : i32
    return %arg0, %c0_i32 : i32, i32
  }
  func.func @transform_3(%arg0: i32) -> (i32, i32) {
    %c0_i32 = arith.constant 0 : i32
    %c0_i32_0 = arith.constant 0 : i32
    %c0_i32_1 = arith.constant 0 : i32
    return %c0_i32, %c0_i32_0 : i32, i32
  }
  func.func @transform_4(%arg0: i32) -> (i32, i32) {
    %c0_i32 = arith.constant 0 : i32
    %c0_i32_0 = arith.constant 0 : i32
    %c0_i32_1 = arith.constant 0 : i32
    return %c0_i32, %c0_i32_0 : i32, i32
  }
  func.func @transform_5(%arg0: i32) -> (i32, i32) {
    %c0_i32 = arith.constant 0 : i32
    %c0_i32_0 = arith.constant 0 : i32
    %c0_i32_1 = arith.constant 0 : i32
    return %c0_i32, %c0_i32_0 : i32, i32
  }
  func.func @transform_6(%arg0: i32) -> (i32, i32) {
    %c0_i32 = arith.constant 0 : i32
    %c0_i32_0 = arith.constant 0 : i32
    return %arg0, %c0_i32 : i32, i32
  }
}

</mosaic_0001>

<llo_original>
// kernel: tpu_custom_call.1
$region0: #{tpu_custom_call.1}
  #allocation0 [shape = 'u32[]', space=smem, size = 0x4, offset = 0x4, fixed_abs, tag = 'smem constant byte address 0x4 - core index']
  #allocation1 [shape = 'u32[144,128]{1,0:T(1,128)}', space=vmem, size = 0x12000, scoped, tag = 'internal scratch']
  %s0 = inlined_call_operand.hbm [shape: f32[2,128], index: 0, kind: input, shape index: {}]
  %s1 = inlined_call_operand.hbm [shape: f32[16,128], index: 1, kind: input, shape index: {}]
  %s2 = inlined_call_operand.vmem [shape: f32[2,8], index: 2, kind: input, shape index: {}]
  %s3 = inlined_call_operand.hbm [shape: f32[128,128], index: 3, kind: input, shape index: {}]
  %s4 = inlined_call_operand.hbm [shape: f32[128,128], index: 4, kind: input, shape index: {}]
  %s5 = inlined_call_operand.vmem [shape: f32[1,128], index: 5, kind: input, shape index: {}]
  %s6 = inlined_call_operand.hbm [shape: f32[2,8], index: 6, kind: output, shape index: {}]
  %s7 = sld [smem:[#allocation0]]
  $region50: #{tpu_custom_call.1} parent=0
    _
  %s9 = ssub.s32 1, %s7
  %s10 = scalar_select 0, %s9, %s7
  $region1: #{tpu_custom_call.1} parent=0
    #allocation2 [shape = 'u8[1024]{0}', space=vmem, size = 0x400, scoped, tag = 'input window, operand 0, single buffered']
    #allocation3 [shape = 's32[1]{0}', space=sflag, size = 0x4, scoped, tag = 'scoped memory for tpu_custom_call.1']
    #allocation4 [shape = 's32[1]{0}', space=sflag, size = 0x4, scoped, tag = 'scoped memory for tpu_custom_call.1']
    #allocation5 [shape = 'u8[8192]{0}', space=vmem, size = 0x2000, scoped, tag = 'input window, operand 1, single buffered']
    #allocation6 [shape = 's32[1]{0}', space=sflag, size = 0x4, scoped, tag = 'scoped memory for tpu_custom_call.1']
    #allocation7 [shape = 'u8[65536]{0}', space=vmem, size = 0x10000, scoped, tag = 'input window, operand 3, single buffered']
    #allocation8 [shape = 'u8[65536]{0}', space=vmem, size = 0x10000, scoped, tag = 'input window, operand 4, single buffered']
    #allocation9 [shape = 's32[1]{0}', space=sflag, size = 0x4, scoped, tag = 'scoped memory for tpu_custom_call.1']
    #allocation10 [shape = 'u8[1024]{0}', space=vmem, size = 0x400, scoped, tag = 'output window, operand 0, single buffered']
    %11 = vsyncpa [#allocation3], 0
    %12 = vsyncpa [#allocation6], 0
    %13 = vsyncpa [#allocation9], 0
    %14 = vsyncpa [#allocation4], 0
    // Predicated region
    $region2: #{tpu_custom_call.1} parent=1 // pred_check
      _
    $region3: #{tpu_custom_call.1} parent=1 // pred_check_branch
      %16 = sbr.rel (0) target = $region5
    $region4: #{tpu_custom_call.1} parent=1 // pred_region
      %s18 = ssub.s32 32, 32
      %19 = vsyncadd [#allocation3], %s18
      %s21 = sshll.u32 [#allocation2], 4
      %s22 = int_to_ptr.vmem [resolvable:$true] %s21
      %24 = dma.hbm_to_vmem [thread:$0]  %s0, 32, %s22, [#allocation3]
    $region5: #{tpu_custom_call.1} parent=1 // pred_fallthru
      _
    // Predicated region
    $region6: #{tpu_custom_call.1} parent=1 // pred_check
      _
    $region7: #{tpu_custom_call.1} parent=1 // pred_check_branch
      %26 = sbr.rel (0) target = $region9
    $region8: #{tpu_custom_call.1} parent=1 // pred_region
      %s28 = ssub.s32 256, 256
      %29 = vsyncadd [#allocation6], %s28
      %s30 = sshll.u32 [#allocation5], 4
      %s31 = int_to_ptr.vmem [resolvable:$true] %s30
      %36 = dma.hbm_to_vmem [thread:$0]  %s1, 256, %s31, [#allocation6], 128, 128, 8
    $region9: #{tpu_custom_call.1} parent=1 // pred_fallthru
      _
    // Predicated region
    $region10: #{tpu_custom_call.1} parent=1 // pred_check
      _
    $region11: #{tpu_custom_call.1} parent=1 // pred_check_branch
      %38 = sbr.rel (0) target = $region13
    $region12: #{tpu_custom_call.1} parent=1 // pred_region
      _
    $region13: #{tpu_custom_call.1} parent=1 // pred_fallthru
      _
    // Predicated region
    $region14: #{tpu_custom_call.1} parent=1 // pred_check
      _
    $region15: #{tpu_custom_call.1} parent=1 // pred_check_branch
      %40 = sbr.rel (0) target = $region17
    $region16: #{tpu_custom_call.1} parent=1 // pred_region
      %s42 = ssub.s32 2048, 2048
      %43 = vsyncadd [#allocation6], %s42
      %s44 = sshll.u32 [#allocation7], 4
      %s45 = int_to_ptr.vmem [resolvable:$true] %s44
      %50 = dma.hbm_to_vmem [thread:$0]  %s3, 2048, %s45, [#allocation6], 128, 128, 8
    $region17: #{tpu_custom_call.1} parent=1 // pred_fallthru
      _
    // Predicated region
    $region18: #{tpu_custom_call.1} parent=1 // pred_check
      _
    $region19: #{tpu_custom_call.1} parent=1 // pred_check_branch
      %52 = sbr.rel (0) target = $region21
    $region20: #{tpu_custom_call.1} parent=1 // pred_region
      %s54 = ssub.s32 2048, 2048
      %55 = vsyncadd [#allocation9], %s54
      %s56 = sshll.u32 [#allocation8], 4
      %s57 = int_to_ptr.vmem [resolvable:$true] %s56
      %62 = dma.hbm_to_vmem [thread:$0]  %s4, 2048, %s57, [#allocation9], 128, 128, 8
    $region21: #{tpu_custom_call.1} parent=1 // pred_fallthru
      _
    // Predicated region
    $region22: #{tpu_custom_call.1} parent=1 // pred_check
      _
    $region23: #{tpu_custom_call.1} parent=1 // pred_check_branch
      %64 = sbr.rel (0) target = $region25
    $region24: #{tpu_custom_call.1} parent=1 // pred_region
      _
    $region25: #{tpu_custom_call.1} parent=1 // pred_fallthru
      _
    // Predicated region
    $region26: #{tpu_custom_call.1} parent=1 // pred_check
      _
    $region27: #{tpu_custom_call.1} parent=1 // pred_check_branch
      %66 = sbr.rel (0) target = $region29
    $region28: #{tpu_custom_call.1} parent=1 // pred_region
      %67 = dma.done [#allocation3], 32
    $region29: #{tpu_custom_call.1} parent=1 // pred_fallthru
      _
    // Predicated region
    $region30: #{tpu_custom_call.1} parent=1 // pred_check
      _
    $region31: #{tpu_custom_call.1} parent=1 // pred_check_branch
      %69 = sbr.rel (0) target = $region33
    $region32: #{tpu_custom_call.1} parent=1 // pred_region
      %70 = dma.done [#allocation6], 256
    $region33: #{tpu_custom_call.1} parent=1 // pred_fallthru
      _
    // Predicated region
    $region34: #{tpu_custom_call.1} parent=1 // pred_check
      _
    $region35: #{tpu_custom_call.1} parent=1 // pred_check_branch
      %72 = sbr.rel (0) target = $region37
    $region36: #{tpu_custom_call.1} parent=1 // pred_region
      %73 = dma.done [#allocation6], 2048
    $region37: #{tpu_custom_call.1} parent=1 // pred_fallthru
      _
    // Predicated region
    $region38: #{tpu_custom_call.1} parent=1 // pred_check
      _
    $region39: #{tpu_custom_call.1} parent=1 // pred_check_branch
      %75 = sbr.rel (0) target = $region41
    $region40: #{tpu_custom_call.1} parent=1 // pred_region
      %76 = dma.done [#allocation9], 2048
    $region41: #{tpu_custom_call.1} parent=1 // pred_fallthru
      _
    %v77 = vld [vmem:[#allocation7] sm:$0xff]
    %v78 = vld [vmem:[#allocation7 + $0x8] sm:$0xff]
    %v79 = vld [vmem:[#allocation7 + $0x10] sm:$0xff]
    %v80 = vld [vmem:[#allocation7 + $0x18] sm:$0xff]
    %v81 = vld [vmem:[#allocation7 + $0x20] sm:$0xff]
    %v82 = vld [vmem:[#allocation7 + $0x28] sm:$0xff]
    %v83 = vld [vmem:[#allocation7 + $0x30] sm:$0xff]
    %v84 = vld [vmem:[#allocation7 + $0x38] sm:$0xff]
    %v85 = vld [vmem:[#allocation7 + $0x40] sm:$0xff]
    %v86 = vld [vmem:[#allocation7 + $0x48] sm:$0xff]
    %v87 = vld [vmem:[#allocation7 + $0x50] sm:$0xff]
    %v88 = vld [vmem:[#allocation7 + $0x58] sm:$0xff]
    %v89 = vld [vmem:[#allocation7 + $0x60] sm:$0xff]
    %v90 = vld [vmem:[#allocation7 + $0x68] sm:$0xff]
    %v91 = vld [vmem:[#allocation7 + $0x70] sm:$0xff]
    %v92 = vld [vmem:[#allocation7 + $0x78] sm:$0xff]
    %v93 = vld [vmem:[#allocation8] sm:$0xff]
    %v94 = vld [vmem:[#allocation8 + $0x8] sm:$0xff]
    %v95 = vld [vmem:[#allocation8 + $0x10] sm:$0xff]
    %v96 = vld [vmem:[#allocation8 + $0x18] sm:$0xff]
    %v97 = vld [vmem:[#allocation8 + $0x20] sm:$0xff]
    %v98 = vld [vmem:[#allocation8 + $0x28] sm:$0xff]
    %v99 = vld [vmem:[#allocation8 + $0x30] sm:$0xff]
    %v100 = vld [vmem:[#allocation8 + $0x38] sm:$0xff]
    %v101 = vld [vmem:[#allocation8 + $0x40] sm:$0xff]
    %v102 = vld [vmem:[#allocation8 + $0x48] sm:$0xff]
    %v103 = vld [vmem:[#allocation8 + $0x50] sm:$0xff]
    %v104 = vld [vmem:[#allocation8 + $0x58] sm:$0xff]
    %v105 = vld [vmem:[#allocation8 + $0x60] sm:$0xff]
    %v106 = vld [vmem:[#allocation8 + $0x68] sm:$0xff]
    %v107 = vld [vmem:[#allocation8 + $0x70] sm:$0xff]
    %v108 = vld [vmem:[#allocation8 + $0x78] sm:$0xff]
    %v109 = vld [vmem:[%s5] sm:$0x1]
    %v110 = vld [vmem:[#allocation2] sm:$0x3]
    %v111 = vld [vmem:[#allocation5] sm:$0xff]
    %v112 = vld [vmem:[#allocation5 + $0x8] sm:$0xff]
    %v113 = vld [vmem:[%s2] sm:$0x3]
    %114 = vmatprep.subr.mxu0 0.0
    %115 = vmatpush1.msra.mxu0 %v92
    %116 = vmatprep.subr.mxu0 0.0
    %117 = vmatpush1.msra.mxu0 %v91
    %118 = vmatprep.subr.mxu0 0.0
    %119 = vmatpush1.msra.mxu0 %v90
    %120 = vmatprep.subr.mxu0 0.0
    %121 = vmatpush1.msra.mxu0 %v89
    %122 = vmatprep.subr.mxu0 0.0
    %123 = vmatpush1.msra.mxu0 %v88
    %124 = vmatprep.subr.mxu0 0.0
    %125 = vmatpush1.msra.mxu0 %v87
    %126 = vmatprep.subr.mxu0 0.0
    %127 = vmatpush1.msra.mxu0 %v86
    %128 = vmatprep.subr.mxu0 0.0
    %129 = vmatpush1.msra.mxu0 %v85
    %130 = vmatprep.subr.mxu0 0.0
    %131 = vmatpush1.msra.mxu0 %v84
    %132 = vmatprep.subr.mxu0 0.0
    %133 = vmatpush1.msra.mxu0 %v83
    %134 = vmatprep.subr.mxu0 0.0
    %135 = vmatpush1.msra.mxu0 %v82
    %136 = vmatprep.subr.mxu0 0.0
    %137 = vmatpush1.msra.mxu0 %v81
    %138 = vmatprep.subr.mxu0 0.0
    %139 = vmatpush1.msra.mxu0 %v80
    %140 = vmatprep.subr.mxu0 0.0
    %141 = vmatpush1.msra.mxu0 %v79
    %142 = vmatprep.subr.mxu0 0.0
    %143 = vmatpush1.msra.mxu0 %v78
    %144 = vmatprep.subr.mxu0 0.0
    %145 = vmatpush1.msra.mxu0 %v77
    %146 = vmatprep.subr.mxu0 0.0
    %147 = vmatpush2.msra.mxu0 0.0
    %148 = vmatprep.subr.mxu0 0.0
    %149 = vmatpush2.msra.mxu0 0.0
    %150 = vmatprep.subr.mxu0 0.0
    %151 = vmatpush2.msra.mxu0 0.0
    %152 = vmatprep.subr.mxu0 0.0
    %153 = vmatpush2.msra.mxu0 0.0
    %154 = vmatprep.subr.mxu0 0.0
    %155 = vmatpush2.msra.mxu0 0.0
    %156 = vmatprep.subr.mxu0 0.0
    %157 = vmatpush2.msra.mxu0 0.0
    %158 = vmatprep.subr.mxu0 0.0
    %159 = vmatpush2.msra.mxu0 0.0
    %160 = vmatprep.subr.mxu0 0.0
    %161 = vmatpush2.msra.mxu0 0.0
    %162 = vmatprep.subr.mxu0 0.0
    %163 = vmatpush2.msra.mxu0 0.0
    %164 = vmatprep.subr.mxu0 0.0
    %165 = vmatpush2.msra.mxu0 0.0
    %166 = vmatprep.subr.mxu0 0.0
    %167 = vmatpush2.msra.mxu0 0.0
    %168 = vmatprep.subr.mxu0 0.0
    %169 = vmatpush2.msra.mxu0 0.0
    %170 = vmatprep.subr.mxu0 0.0
    %171 = vmatpush2.msra.mxu0 0.0
    %172 = vmatprep.subr.mxu0 0.0
    %173 = vmatpush2.msra.mxu0 0.0
    %174 = vmatprep.subr.mxu0 0.0
    %175 = vmatpush2.msra.mxu0 0.0
    %176 = vmatprep.subr.mxu0 0.0
    %177 = vmatpush2.msra.mxu0 0.0
    %178 = vmatprep.mubr.f32.mxu0 0.0
    %179 = vmatmul.mubr.f32.gmra.mxu0 %v111
    %v180 = vpop.f32.mrf.mxu0
    %v181 = vadd.f32 0.0, %v180
    %v182 = vpop.f32.mrf.mxu0
    %183 = vmatprep.mubr.f32.mxu0 0.0
    %184 = vmatmul.mubr.f32.gmra.mxu0 %v112
    %v185 = vpop.f32.mrf.mxu0
    %v186 = vadd.f32 0.0, %v185
    %v187 = vpop.f32.mrf.mxu0
    %188 = vdwg.mxu0
    %189 = vmatprep.subr.mxu0 0.0
    %190 = vmatpush1.msra.mxu0 %v108
    %191 = vmatprep.subr.mxu0 0.0
    %192 = vmatpush1.msra.mxu0 %v107
    %193 = vmatprep.subr.mxu0 0.0
    %194 = vmatpush1.msra.mxu0 %v106
    %195 = vmatprep.subr.mxu0 0.0
    %196 = vmatpush1.msra.mxu0 %v105
    %197 = vmatprep.subr.mxu0 0.0
    %198 = vmatpush1.msra.mxu0 %v104
    %199 = vmatprep.subr.mxu0 0.0
    %200 = vmatpush1.msra.mxu0 %v103
    %201 = vmatprep.subr.mxu0 0.0
    %202 = vmatpush1.msra.mxu0 %v102
    %203 = vmatprep.subr.mxu0 0.0
    %204 = vmatpush1.msra.mxu0 %v101
    %205 = vmatprep.subr.mxu0 0.0
    %206 = vmatpush1.msra.mxu0 %v100
    %207 = vmatprep.subr.mxu0 0.0
    %208 = vmatpush1.msra.mxu0 %v99
    %209 = vmatprep.subr.mxu0 0.0
    %210 = vmatpush1.msra.mxu0 %v98
    %211 = vmatprep.subr.mxu0 0.0
    %212 = vmatpush1.msra.mxu0 %v97
    %213 = vmatprep.subr.mxu0 0.0
    %214 = vmatpush1.msra.mxu0 %v96
    %215 = vmatprep.subr.mxu0 0.0
    %216 = vmatpush1.msra.mxu0 %v95
    %217 = vmatprep.subr.mxu0 0.0
    %218 = vmatpush1.msra.mxu0 %v94
    %219 = vmatprep.subr.mxu0 0.0
    %220 = vmatpush1.msra.mxu0 %v93
    %221 = vmatprep.subr.mxu0 0.0
    %222 = vmatpush2.msra.mxu0 0.0
    %223 = vmatprep.subr.mxu0 0.0
    %224 = vmatpush2.msra.mxu0 0.0
    %225 = vmatprep.subr.mxu0 0.0
    %226 = vmatpush2.msra.mxu0 0.0
    %227 = vmatprep.subr.mxu0 0.0
    %228 = vmatpush2.msra.mxu0 0.0
    %229 = vmatprep.subr.mxu0 0.0
    %230 = vmatpush2.msra.mxu0 0.0
    %231 = vmatprep.subr.mxu0 0.0
    %232 = vmatpush2.msra.mxu0 0.0
    %233 = vmatprep.subr.mxu0 0.0
    %234 = vmatpush2.msra.mxu0 0.0
    %235 = vmatprep.subr.mxu0 0.0
    %236 = vmatpush2.msra.mxu0 0.0
    %237 = vmatprep.subr.mxu0 0.0
    %238 = vmatpush2.msra.mxu0 0.0
    %239 = vmatprep.subr.mxu0 0.0
    %240 = vmatpush2.msra.mxu0 0.0
    %241 = vmatprep.subr.mxu0 0.0
    %242 = vmatpush2.msra.mxu0 0.0
    %243 = vmatprep.subr.mxu0 0.0
    %244 = vmatpush2.msra.mxu0 0.0
    %245 = vmatprep.subr.mxu0 0.0
    %246 = vmatpush2.msra.mxu0 0.0
    %247 = vmatprep.subr.mxu0 0.0
    %248 = vmatpush2.msra.mxu0 0.0
    %249 = vmatprep.subr.mxu0 0.0
    %250 = vmatpush2.msra.mxu0 0.0
    %251 = vmatprep.subr.mxu0 0.0
    %252 = vmatpush2.msra.mxu0 0.0
    %253 = vmatprep.mubr.f32.mxu0 0.0
    %254 = vmatmul.mubr.f32.gmra.mxu0 %v110
    %v255 = vpop.f32.mrf.mxu0
    %v256 = vadd.f32 0.0, %v255
    %v257 = vpop.f32.mrf.mxu0
    %258 = vdwg.mxu0
    %v261 = vunpack.c.l.s4 1966171168
    %v262 = vunpack.c.0.s8 %v261
    %v263 = vlaneseq
    %v264 = vshrl.u32 %v263, 7
    %v265 = vsub.s32 %v262, %v264
    %v266 = vrot.slane %v256, %v265
    %v267 = vcombine.high %v266, %v266
    %v269 = vunpack.c.l.s4 1966171168
    %v270 = vunpack.c.0.s8 %v269
    %v271 = vlaneseq
    %v272 = vshrl.u32 %v271, 7
    %v273 = vsub.s32 %v270, %v272
    %v274 = vrot.slane %v266, %v273
    %v276 = vunpack.c.l.s4 1966171168
    %v277 = vunpack.c.0.s8 %v276
    %v278 = vlaneseq
    %v279 = vshrl.u32 %v278, 7
    %v280 = vsub.s32 %v277, %v279
    %v281 = vrot.slane %v267, %v280
    %v282 = vlaneseq
    %v283 = vshrl.u32 %v282, 7
    %v284 = vsub.s32 0, %v283
    %v285 = vrot.slane %v274, %v284
    %v286 = vlaneseq
    %v287 = vshrl.u32 %v286, 7
    %v288 = vsub.s32 0, %v287
    %v289 = vrot.slane %v281, %v288
    %v292 = vadd.f32 %v181, %v285
    %v293 = vadd.f32 %v186, %v289
    %v294 = vtanh.pop %v292
    %v295 = vtanh.pop %v293
    %v297 = vlaneseq
    %v298 = vshrl.u32 %v297, 7
    %v299 = vsub.s32 0, %v298
    %v300 = vrot.slane %v109, %v299
    %v302 = vmul.f32 %v294, %v300
    %v303 = vmul.f32 %v295, %v300
    %304 = vadd.xlane.f32.xlu0 %v302
    %v305 = vpop.xlane.xlu0 %304
    %306 = vadd.xlane.f32.xlu0 %v303
    %v307 = vpop.xlane.xlu0 %306
    %v309 = vlaneseq
    %v310 = vshrl.u32 %v309, 7
    %v311 = vsub.s32 0, %v310
    %v312 = vrot.slane %v113, %v311
    %314 = vbcast.lane.b32.xlu0 %v312, 256
    %v315 = vpop.permute.xlu0 %314
    %v316 = vlaneseq
    %v317 = vshrl.u32 %v316, 7
    %v318 = vsub.s32 1, %v317
    %v319 = vrot.slane %v113, %v318
    %321 = vbcast.lane.b32.xlu0 %v319, 256
    %v322 = vpop.permute.xlu0 %321
    %v325 = vadd.f32 %v305, %v315
    %v326 = vadd.f32 %v307, %v322
    %329 = vset.pattern.permute.xlu0 0
    %330 = vperm.xlu0 %329, %v325
    %v331 = vpop.permute.xlu0 %330
    %332 = vset.pattern.permute.xlu0 0
    %333 = vperm.xlu0 %332, %v326
    %v334 = vpop.permute.xlu0 %333
    %v335 = vlaneseq
    %v336 = vand.u32 %v335, 127
    %v337 = vlaneseq
    %v338 = vshrl.u32 %v337, 7
    %v339 = vsub.s32 %v336, %v338
    %v340 = vrot.slane %v331, %v339
    %v341 = vlaneseq
    %v342 = vshrl.u32 %v341, 7
    %v343 = vsub.s32 %v336, %v342
    %v344 = vrot.slane %v334, %v343
    %vm345 = vcmask 1041409
    %v346 = vsel %vm345, %v344, %v340
    %vm348 = vcmask 58368
    %v349 = vsel %vm348, %v346, -inf
    %350 = vmax.xlane.f32.xlu0 %v349
    %v351 = vpop.xlane.xlu0 %350
    %v353 = vlaneseq
    %v354 = vshrl.u32 %v353, 7
    %v355 = vsub.s32 0, %v354
    %v356 = vrot.slane %v351, %v355
    %v357 = vlaneseq
    %v358 = vshrl.u32 %v357, 7
    %v359 = vsub.s32 1, %v358
    %v360 = vrot.slane %v351, %v359
    %v363 = vsub.f32 %v325, %v356
    %v364 = vsub.f32 %v326, %v360
    %v365 = vmul.f32 %v363, 1.442695
    %v366 = vpow.pop %v365
    %v367 = vmul.f32 %v364, 1.442695
    %v368 = vpow.pop %v367
    %371 = vset.pattern.permute.xlu0 0
    %372 = vperm.xlu0 %371, %v366
    %v373 = vpop.permute.xlu0 %372
    %374 = vset.pattern.permute.xlu0 0
    %375 = vperm.xlu0 %374, %v368
    %v376 = vpop.permute.xlu0 %375
    %v377 = vlaneseq
    %v378 = vshrl.u32 %v377, 7
    %v379 = vsub.s32 %v336, %v378
    %v380 = vrot.slane %v373, %v379
    %v381 = vlaneseq
    %v382 = vshrl.u32 %v381, 7
    %v383 = vsub.s32 %v336, %v382
    %v384 = vrot.slane %v376, %v383
    %v385 = vsel %vm345, %v384, %v380
    %v387 = vsel %vm348, %v385, 0.0
    %388 = vadd.xlane.f32.xlu0 %v387
    %v389 = vpop.xlane.xlu0 %388
    %v390 = vlog2.pop %v389
    %v391 = vmul.f32 %v390, 0.6931472
    %v393 = vlaneseq
    %v394 = vshrl.u32 %v393, 7
    %v395 = vsub.s32 0, %v394
    %v396 = vrot.slane %v391, %v395
    %v397 = vlaneseq
    %v398 = vshrl.u32 %v397, 7
    %v399 = vsub.s32 1, %v398
    %v400 = vrot.slane %v391, %v399
    %v403 = vsub.f32 %v363, %v396
    %v404 = vsub.f32 %v364, %v400
    %407 = vset.pattern.permute.xlu0 0
    %408 = vperm.xlu0 %407, %v403
    %v409 = vpop.permute.xlu0 %408
    %410 = vset.pattern.permute.xlu0 0
    %411 = vperm.xlu0 %410, %v404
    %v412 = vpop.permute.xlu0 %411
    %v413 = vlaneseq
    %v414 = vshrl.u32 %v413, 7
    %v415 = vsub.s32 %v336, %v414
    %v416 = vrot.slane %v409, %v415
    %v417 = vlaneseq
    %v418 = vshrl.u32 %v417, 7
    %v419 = vsub.s32 %v336, %v418
    %v420 = vrot.slane %v412, %v419
    %v421 = vsel %vm345, %v420, %v416
    %423 = vst.msk [vmem:[#allocation10] sm:$0x3] %vm348, %v421
    // Predicated region
    $region42: #{tpu_custom_call.1} parent=1 // pred_check
      _
    $region43: #{tpu_custom_call.1} parent=1 // pred_check_branch
      %425 = sbr.rel (0) target = $region45
    $region44: #{tpu_custom_call.1} parent=1 // pred_region
      %s427 = ssub.s32 32, 32
      %428 = vsyncadd [#allocation4], %s427
      %s430 = sshll.u32 [#allocation10], 4
      %s431 = int_to_ptr.vmem [resolvable:$true] %s430
      %433 = dma.vmem_to_hbm [thread:$0]  %s431, 32, %s6, [#allocation4]
    $region45: #{tpu_custom_call.1} parent=1 // pred_fallthru
      _
    // Predicated region
    $region46: #{tpu_custom_call.1} parent=1 // pred_check
      _
    $region47: #{tpu_custom_call.1} parent=1 // pred_check_branch
      %435 = sbr.rel (0) target = $region49
    $region48: #{tpu_custom_call.1} parent=1 // pred_region
      %436 = dma.done [#allocation4], 32
    $region49: #{tpu_custom_call.1} parent=1 // pred_fallthru
      _
    %437 = vsyncpa [#allocation3], 1
    %438 = vsyncpa [#allocation6], 1
    %439 = vsyncpa [#allocation9], 1
    %440 = vsyncpa [#allocation4], 1

// kernel: tpu_custom_call.1
$region0: #{tpu_custom_call.1}
  #allocation0 [shape = 'u32[]', space=smem, size = 0x4, offset = 0x4, fixed_abs, tag = 'smem constant byte address 0x4 - core index']
  #allocation1 [shape = 'u32[144,128]{1,0:T(1,128)}', space=vmem, size = 0x12000, scoped, tag = 'internal scratch']
  %s0 = inlined_call_operand.hbm [shape: f32[2,128], index: 0, kind: input, shape index: {}]
  %s1 = inlined_call_operand.hbm [shape: f32[16,128], index: 1, kind: input, shape index: {}]
  %s2 = inlined_call_operand.vmem [shape: f32[2,8], index: 2, kind: input, shape index: {}]
  %s3 = inlined_call_operand.hbm [shape: f32[128,128], index: 3, kind: input, shape index: {}]
  %s4 = inlined_call_operand.hbm [shape: f32[128,128], index: 4, kind: input, shape index: {}]
  %s5 = inlined_call_operand.vmem [shape: f32[1,128], index: 5, kind: input, shape index: {}]
  %s6 = inlined_call_operand.hbm [shape: f32[2,8], index: 6, kind: output, shape index: {}]
  %s7 = sld [smem:[#allocation0]]
  $region50: #{tpu_custom_call.1} parent=0
    _
  %s9 = ssub.s32 1, %s7
  %s10 = scalar_select 0, %s9, %s7
  $region1: #{tpu_custom_call.1} parent=0
    #allocation2 [shape = 'u8[1024]{0}', space=vmem, size = 0x400, scoped, tag = 'input window, operand 0, single buffered']
    #allocation3 [shape = 's32[1]{0}', space=sflag, size = 0x4, scoped, tag = 'scoped memory for tpu_custom_call.1']
    #allocation4 [shape = 's32[1]{0}', space=sflag, size = 0x4, scoped, tag = 'scoped memory for tpu_custom_call.1']
    #allocation5 [shape = 'u8[8192]{0}', space=vmem, size = 0x2000, scoped, tag = 'input window, operand 1, single buffered']
    #allocation6 [shape = 's32[1]{0}', space=sflag, size = 0x4, scoped, tag = 'scoped memory for tpu_custom_call.1']
    #allocation7 [shape = 'u8[65536]{0}', space=vmem, size = 0x10000, scoped, tag = 'input window, operand 3, single buffered']
    #allocation8 [shape = 'u8[65536]{0}', space=vmem, size = 0x10000, scoped, tag = 'input window, operand 4, single buffered']
    #allocation9 [shape = 's32[1]{0}', space=sflag, size = 0x4, scoped, tag = 'scoped memory for tpu_custom_call.1']
    #allocation10 [shape = 'u8[1024]{0}', space=vmem, size = 0x400, scoped, tag = 'output window, operand 0, single buffered']
    %11 = vsyncpa [#allocation3], 0
    %12 = vsyncpa [#allocation6], 0
    %13 = vsyncpa [#allocation9], 0
    %14 = vsyncpa [#allocation4], 0
    // Predicated region
    $region2: #{tpu_custom_call.1} parent=1 // pred_check
      _
    $region3: #{tpu_custom_call.1} parent=1 // pred_check_branch
      %16 = sbr.rel (0) target = $region5
    $region4: #{tpu_custom_call.1} parent=1 // pred_region
      %s18 = ssub.s32 32, 32
      %19 = vsyncadd [#allocation3], %s18
      %s21 = sshll.u32 [#allocation2], 4
      %s22 = int_to_ptr.vmem [resolvable:$true] %s21
      %24 = dma.hbm_to_vmem [thread:$0]  %s0, 32, %s22, [#allocation3]
    $region5: #{tpu_custom_call.1} parent=1 // pred_fallthru
      _
    // Predicated region
    $region6: #{tpu_custom_call.1} parent=1 // pred_check
      _
    $region7: #{tpu_custom_call.1} parent=1 // pred_check_branch
      %26 = sbr.rel (0) target = $region9
    $region8: #{tpu_custom_call.1} parent=1 // pred_region
      %s28 = ssub.s32 256, 256
      %29 = vsyncadd [#allocation6], %s28
      %s30 = sshll.u32 [#allocation5], 4
      %s31 = int_to_ptr.vmem [resolvable:$true] %s30
      %36 = dma.hbm_to_vmem [thread:$0]  %s1, 256, %s31, [#allocation6], 128, 128, 8
    $region9: #{tpu_custom_call.1} parent=1 // pred_fallthru
      _
    // Predicated region
    $region10: #{tpu_custom_call.1} parent=1 // pred_check
      _
    $region11: #{tpu_custom_call.1} parent=1 // pred_check_branch
      %38 = sbr.rel (0) target = $region13
    $region12: #{tpu_custom_call.1} parent=1 // pred_region
      _
    $region13: #{tpu_custom_call.1} parent=1 // pred_fallthru
      _
    // Predicated region
    $region14: #{tpu_custom_call.1} parent=1 // pred_check
      _
    $region15: #{tpu_custom_call.1} parent=1 // pred_check_branch
      %40 = sbr.rel (0) target = $region17
    $region16: #{tpu_custom_call.1} parent=1 // pred_region
      %s42 = ssub.s32 2048, 2048
      %43 = vsyncadd [#allocation6], %s42
      %s44 = sshll.u32 [#allocation7], 4
      %s45 = int_to_ptr.vmem [resolvable:$true] %s44
      %50 = dma.hbm_to_vmem [thread:$0]  %s3, 2048, %s45, [#allocation6], 128, 128, 8
    $region17: #{tpu_custom_call.1} parent=1 // pred_fallthru
      _
    // Predicated region
    $region18: #{tpu_custom_call.1} parent=1 // pred_check
      _
    $region19: #{tpu_custom_call.1} parent=1 // pred_check_branch
      %52 = sbr.rel (0) target = $region21
    $region20: #{tpu_custom_call.1} parent=1 // pred_region
      %s54 = ssub.s32 2048, 2048
      %55 = vsyncadd [#allocation9], %s54
      %s56 = sshll.u32 [#allocation8], 4
      %s57 = int_to_ptr.vmem [resolvable:$true] %s56
      %62 = dma.hbm_to_vmem [thread:$0]  %s4, 2048, %s57, [#allocation9], 128, 128, 8
    $region21: #{tpu_custom_call.1} parent=1 // pred_fallthru
      _
    // Predicated region
    $region22: #{tpu_custom_call.1} parent=1 // pred_check
      _
    $region23: #{tpu_custom_call.1} parent=1 // pred_check_branch
      %64 = sbr.rel (0) target = $region25
    $region24: #{tpu_custom_call.1} parent=1 // pred_region
      _
    $region25: #{tpu_custom_call.1} parent=1 // pred_fallthru
      _
    // Predicated region
    $region26: #{tpu_custom_call.1} parent=1 // pred_check
      _
    $region27: #{tpu_custom_call.1} parent=1 // pred_check_branch
      %66 = sbr.rel (0) target = $region29
    $region28: #{tpu_custom_call.1} parent=1 // pred_region
      %67 = dma.done [#allocation3], 32
    $region29: #{tpu_custom_call.1} parent=1 // pred_fallthru
      _
    // Predicated region
    $region30: #{tpu_custom_call.1} parent=1 // pred_check
      _
    $region31: #{tpu_custom_call.1} parent=1 // pred_check_branch
      %69 = sbr.rel (0) target = $region33
    $region32: #{tpu_custom_call.1} parent=1 // pred_region
      %70 = dma.done [#allocation6], 256
    $region33: #{tpu_custom_call.1} parent=1 // pred_fallthru
      _
    // Predicated region
    $region34: #{tpu_custom_call.1} parent=1 // pred_check
      _
    $region35: #{tpu_custom_call.1} parent=1 // pred_check_branch
      %72 = sbr.rel (0) target = $region37
    $region36: #{tpu_custom_call.1} parent=1 // pred_region
      %73 = dma.done [#allocation6], 2048
    $region37: #{tpu_custom_call.1} parent=1 // pred_fallthru
      _
    // Predicated region
    $region38: #{tpu_custom_call.1} parent=1 // pred_check
      _
    $region39: #{tpu_custom_call.1} parent=1 // pred_check_branch
      %75 = sbr.rel (0) target = $region41
    $region40: #{tpu_custom_call.1} parent=1 // pred_region
      %76 = dma.done [#allocation9], 2048
    $region41: #{tpu_custom_call.1} parent=1 // pred_fallthru
      _
    %v77 = vld [vmem:[#allocation7] sm:$0xff]
    %v78 = vld [vmem:[#allocation7 + $0x8] sm:$0xff]
    %v79 = vld [vmem:[#allocation7 + $0x10] sm:$0xff]
    %v80 = vld [vmem:[#allocation7 + $0x18] sm:$0xff]
    %v81 = vld [vmem:[#allocation7 + $0x20] sm:$0xff]
    %v82 = vld [vmem:[#allocation7 + $0x28] sm:$0xff]
    %v83 = vld [vmem:[#allocation7 + $0x30] sm:$0xff]
    %v84 = vld [vmem:[#allocation7 + $0x38] sm:$0xff]
    %v85 = vld [vmem:[#allocation7 + $0x40] sm:$0xff]
    %v86 = vld [vmem:[#allocation7 + $0x48] sm:$0xff]
    %v87 = vld [vmem:[#allocation7 + $0x50] sm:$0xff]
    %v88 = vld [vmem:[#allocation7 + $0x58] sm:$0xff]
    %v89 = vld [vmem:[#allocation7 + $0x60] sm:$0xff]
    %v90 = vld [vmem:[#allocation7 + $0x68] sm:$0xff]
    %v91 = vld [vmem:[#allocation7 + $0x70] sm:$0xff]
    %v92 = vld [vmem:[#allocation7 + $0x78] sm:$0xff]
    %v93 = vld [vmem:[#allocation8] sm:$0xff]
    %v94 = vld [vmem:[#allocation8 + $0x8] sm:$0xff]
    %v95 = vld [vmem:[#allocation8 + $0x10] sm:$0xff]
    %v96 = vld [vmem:[#allocation8 + $0x18] sm:$0xff]
    %v97 = vld [vmem:[#allocation8 + $0x20] sm:$0xff]
    %v98 = vld [vmem:[#allocation8 + $0x28] sm:$0xff]
    %v99 = vld [vmem:[#allocation8 + $0x30] sm:$0xff]
    %v100 = vld [vmem:[#allocation8 + $0x38] sm:$0xff]
    %v101 = vld [vmem:[#allocation8 + $0x40] sm:$0xff]
    %v102 = vld [vmem:[#allocation8 + $0x48] sm:$0xff]
    %v103 = vld [vmem:[#allocation8 + $0x50] sm:$0xff]
    %v104 = vld [vmem:[#allocation8 + $0x58] sm:$0xff]
    %v105 = vld [vmem:[#allocation8 + $0x60] sm:$0xff]
    %v106 = vld [vmem:[#allocation8 + $0x68] sm:$0xff]
    %v107 = vld [vmem:[#allocation8 + $0x70] sm:$0xff]
    %v108 = vld [vmem:[#allocation8 + $0x78] sm:$0xff]
    %v109 = vld [vmem:[%s5] sm:$0x1]
    %v110 = vld [vmem:[#allocation2] sm:$0x3]
    %v111 = vld [vmem:[#allocation5] sm:$0xff]
    %v112 = vld [vmem:[#allocation5 + $0x8] sm:$0xff]
    %v113 = vld [vmem:[%s2] sm:$0x3]
    %114 = vmatprep.subr.mxu0 0.0
    %115 = vmatpush1.msra.mxu0 %v92
    %116 = vmatprep.subr.mxu0 0.0
    %117 = vmatpush1.msra.mxu0 %v91
    %118 = vmatprep.subr.mxu0 0.0
    %119 = vmatpush1.msra.mxu0 %v90
    %120 = vmatprep.subr.mxu0 0.0
    %121 = vmatpush1.msra.mxu0 %v89
    %122 = vmatprep.subr.mxu0 0.0
    %123 = vmatpush1.msra.mxu0 %v88
    %124 = vmatprep.subr.mxu0 0.0
    %125 = vmatpush1.msra.mxu0 %v87
    %126 = vmatprep.subr.mxu0 0.0
    %127 = vmatpush1.msra.mxu0 %v86
    %128 = vmatprep.subr.mxu0 0.0
    %129 = vmatpush1.msra.mxu0 %v85
    %130 = vmatprep.subr.mxu0 0.0
    %131 = vmatpush1.msra.mxu0 %v84
    %132 = vmatprep.subr.mxu0 0.0
    %133 = vmatpush1.msra.mxu0 %v83
    %134 = vmatprep.subr.mxu0 0.0
    %135 = vmatpush1.msra.mxu0 %v82
    %136 = vmatprep.subr.mxu0 0.0
    %137 = vmatpush1.msra.mxu0 %v81
    %138 = vmatprep.subr.mxu0 0.0
    %139 = vmatpush1.msra.mxu0 %v80
    %140 = vmatprep.subr.mxu0 0.0
    %141 = vmatpush1.msra.mxu0 %v79
    %142 = vmatprep.subr.mxu0 0.0
    %143 = vmatpush1.msra.mxu0 %v78
    %144 = vmatprep.subr.mxu0 0.0
    %145 = vmatpush1.msra.mxu0 %v77
    %146 = vmatprep.subr.mxu0 0.0
    %147 = vmatpush2.msra.mxu0 0.0
    %148 = vmatprep.subr.mxu0 0.0
    %149 = vmatpush2.msra.mxu0 0.0
    %150 = vmatprep.subr.mxu0 0.0
    %151 = vmatpush2.msra.mxu0 0.0
    %152 = vmatprep.subr.mxu0 0.0
    %153 = vmatpush2.msra.mxu0 0.0
    %154 = vmatprep.subr.mxu0 0.0
    %155 = vmatpush2.msra.mxu0 0.0
    %156 = vmatprep.subr.mxu0 0.0
    %157 = vmatpush2.msra.mxu0 0.0
    %158 = vmatprep.subr.mxu0 0.0
    %159 = vmatpush2.msra.mxu0 0.0
    %160 = vmatprep.subr.mxu0 0.0
    %161 = vmatpush2.msra.mxu0 0.0
    %162 = vmatprep.subr.mxu0 0.0
    %163 = vmatpush2.msra.mxu0 0.0
    %164 = vmatprep.subr.mxu0 0.0
    %165 = vmatpush2.msra.mxu0 0.0
    %166 = vmatprep.subr.mxu0 0.0
    %167 = vmatpush2.msra.mxu0 0.0
    %168 = vmatprep.subr.mxu0 0.0
    %169 = vmatpush2.msra.mxu0 0.0
    %170 = vmatprep.subr.mxu0 0.0
    %171 = vmatpush2.msra.mxu0 0.0
    %172 = vmatprep.subr.mxu0 0.0
    %173 = vmatpush2.msra.mxu0 0.0
    %174 = vmatprep.subr.mxu0 0.0
    %175 = vmatpush2.msra.mxu0 0.0
    %176 = vmatprep.subr.mxu0 0.0
    %177 = vmatpush2.msra.mxu0 0.0
    %178 = vmatprep.mubr.f32.mxu0 0.0
    %179 = vmatmul.mubr.f32.gmra.mxu0 %v111
    %v180 = vpop.f32.mrf.mxu0
    %v181 = vadd.f32 0.0, %v180
    %v182 = vpop.f32.mrf.mxu0
    %183 = vmatprep.mubr.f32.mxu0 0.0
    %184 = vmatmul.mubr.f32.gmra.mxu0 %v112
    %v185 = vpop.f32.mrf.mxu0
    %v186 = vadd.f32 0.0, %v185
    %v187 = vpop.f32.mrf.mxu0
    %188 = vdwg.mxu0
    %189 = vmatprep.subr.mxu0 0.0
    %190 = vmatpush1.msra.mxu0 %v108
    %191 = vmatprep.subr.mxu0 0.0
    %192 = vmatpush1.msra.mxu0 %v107
    %193 = vmatprep.subr.mxu0 0.0
    %194 = vmatpush1.msra.mxu0 %v106
    %195 = vmatprep.subr.mxu0 0.0
    %196 = vmatpush1.msra.mxu0 %v105
    %197 = vmatprep.subr.mxu0 0.0
    %198 = vmatpush1.msra.mxu0 %v104
    %199 = vmatprep.subr.mxu0 0.0
    %200 = vmatpush1.msra.mxu0 %v103
    %201 = vmatprep.subr.mxu0 0.0
    %202 = vmatpush1.msra.mxu0 %v102
    %203 = vmatprep.subr.mxu0 0.0
    %204 = vmatpush1.msra.mxu0 %v101
    %205 = vmatprep.subr.mxu0 0.0
    %206 = vmatpush1.msra.mxu0 %v100
    %207 = vmatprep.subr.mxu0 0.0
    %208 = vmatpush1.msra.mxu0 %v99
    %209 = vmatprep.subr.mxu0 0.0
    %210 = vmatpush1.msra.mxu0 %v98
    %211 = vmatprep.subr.mxu0 0.0
    %212 = vmatpush1.msra.mxu0 %v97
    %213 = vmatprep.subr.mxu0 0.0
    %214 = vmatpush1.msra.mxu0 %v96
    %215 = vmatprep.subr.mxu0 0.0
    %216 = vmatpush1.msra.mxu0 %v95
    %217 = vmatprep.subr.mxu0 0.0
    %218 = vmatpush1.msra.mxu0 %v94
    %219 = vmatprep.subr.mxu0 0.0
    %220 = vmatpush1.msra.mxu0 %v93
    %221 = vmatprep.subr.mxu0 0.0
    %222 = vmatpush2.msra.mxu0 0.0
    %223 = vmatprep.subr.mxu0 0.0
    %224 = vmatpush2.msra.mxu0 0.0
    %225 = vmatprep.subr.mxu0 0.0
    %226 = vmatpush2.msra.mxu0 0.0
    %227 = vmatprep.subr.mxu0 0.0
    %228 = vmatpush2.msra.mxu0 0.0
    %229 = vmatprep.subr.mxu0 0.0
    %230 = vmatpush2.msra.mxu0 0.0
    %231 = vmatprep.subr.mxu0 0.0
    %232 = vmatpush2.msra.mxu0 0.0
    %233 = vmatprep.subr.mxu0 0.0
    %234 = vmatpush2.msra.mxu0 0.0
    %235 = vmatprep.subr.mxu0 0.0
    %236 = vmatpush2.msra.mxu0 0.0
    %237 = vmatprep.subr.mxu0 0.0
    %238 = vmatpush2.msra.mxu0 0.0
    %239 = vmatprep.subr.mxu0 0.0
    %240 = vmatpush2.msra.mxu0 0.0
    %241 = vmatprep.subr.mxu0 0.0
    %242 = vmatpush2.msra.mxu0 0.0
    %243 = vmatprep.subr.mxu0 0.0
    %244 = vmatpush2.msra.mxu0 0.0
    %245 = vmatprep.subr.mxu0 0.0
    %246 = vmatpush2.msra.mxu0 0.0
    %247 = vmatprep.subr.mxu0 0.0
    %248 = vmatpush2.msra.mxu0 0.0
    %249 = vmatprep.subr.mxu0 0.0
    %250 = vmatpush2.msra.mxu0 0.0
    %251 = vmatprep.subr.mxu0 0.0
    %252 = vmatpush2.msra.mxu0 0.0
    %253 = vmatprep.mubr.f32.mxu0 0.0
    %254 = vmatmul.mubr.f32.gmra.mxu0 %v110
    %v255 = vpop.f32.mrf.mxu0
    %v256 = vadd.f32 0.0, %v255
    %v257 = vpop.f32.mrf.mxu0
    %258 = vdwg.mxu0
    %v261 = vunpack.c.l.s4 1966171168
    %v262 = vunpack.c.0.s8 %v261
    %v263 = vlaneseq
    %v264 = vshrl.u32 %v263, 7
    %v265 = vsub.s32 %v262, %v264
    %v266 = vrot.slane %v256, %v265
    %v267 = vcombine.high %v266, %v266
    %v269 = vunpack.c.l.s4 1966171168
    %v270 = vunpack.c.0.s8 %v269
    %v271 = vlaneseq
    %v272 = vshrl.u32 %v271, 7
    %v273 = vsub.s32 %v270, %v272
    %v274 = vrot.slane %v266, %v273
    %v276 = vunpack.c.l.s4 1966171168
    %v277 = vunpack.c.0.s8 %v276
    %v278 = vlaneseq
    %v279 = vshrl.u32 %v278, 7
    %v280 = vsub.s32 %v277, %v279
    %v281 = vrot.slane %v267, %v280
    %v282 = vlaneseq
    %v283 = vshrl.u32 %v282, 7
    %v284 = vsub.s32 0, %v283
    %v285 = vrot.slane %v274, %v284
    %v286 = vlaneseq
    %v287 = vshrl.u32 %v286, 7
    %v288 = vsub.s32 0, %v287
    %v289 = vrot.slane %v281, %v288
    %v292 = vadd.f32 %v181, %v285
    %v293 = vadd.f32 %v186, %v289
    %v294 = vtanh.pop %v292
    %v295 = vtanh.pop %v293
    %v297 = vlaneseq
    %v298 = vshrl.u32 %v297, 7
    %v299 = vsub.s32 0, %v298
    %v300 = vrot.slane %v109, %v299
    %v302 = vmul.f32 %v294, %v300
    %v303 = vmul.f32 %v295, %v300
    %304 = vadd.xlane.f32.xlu0 %v302
    %v305 = vpop.xlane.xlu0 %304
    %306 = vadd.xlane.f32.xlu0 %v303
    %v307 = vpop.xlane.xlu0 %306
    %v309 = vlaneseq
    %v310 = vshrl.u32 %v309, 7
    %v311 = vsub.s32 0, %v310
    %v312 = vrot.slane %v113, %v311
    %314 = vbcast.lane.b32.xlu0 %v312, 256
    %v315 = vpop.permute.xlu0 %314
    %v316 = vlaneseq
    %v317 = vshrl.u32 %v316, 7
    %v318 = vsub.s32 1, %v317
    %v319 = vrot.slane %v113, %v318
    %321 = vbcast.lane.b32.xlu0 %v319, 256
    %v322 = vpop.permute.xlu0 %321
    %v325 = vadd.f32 %v305, %v315
    %v326 = vadd.f32 %v307, %v322
    %329 = vset.pattern.permute.xlu0 0
    %330 = vperm.xlu0 %329, %v325
    %v331 = vpop.permute.xlu0 %330
    %332 = vset.pattern.permute.xlu0 0
    %333 = vperm.xlu0 %332, %v326
    %v334 = vpop.permute.xlu0 %333
    %v335 = vlaneseq
    %v336 = vand.u32 %v335, 127
    %v337 = vlaneseq
    %v338 = vshrl.u32 %v337, 7
    %v339 = vsub.s32 %v336, %v338
    %v340 = vrot.slane %v331, %v339
    %v341 = vlaneseq
    %v342 = vshrl.u32 %v341, 7
    %v343 = vsub.s32 %v336, %v342
    %v344 = vrot.slane %v334, %v343
    %vm345 = vcmask 1041409
    %v346 = vsel %vm345, %v344, %v340
    %vm348 = vcmask 58368
    %v349 = vsel %vm348, %v346, -inf
    %350 = vmax.xlane.f32.xlu0 %v349
    %v351 = vpop.xlane.xlu0 %350
    %v353 = vlaneseq
    %v354 = vshrl.u32 %v353, 7
    %v355 = vsub.s32 0, %v354
    %v356 = vrot.slane %v351, %v355
    %v357 = vlaneseq
    %v358 = vshrl.u32 %v357, 7
    %v359 = vsub.s32 1, %v358
    %v360 = vrot.slane %v351, %v359
    %v363 = vsub.f32 %v325, %v356
    %v364 = vsub.f32 %v326, %v360
    %v365 = vmul.f32 %v363, 1.442695
    %v366 = vpow.pop %v365
    %v367 = vmul.f32 %v364, 1.442695
    %v368 = vpow.pop %v367
    %371 = vset.pattern.permute.xlu0 0
    %372 = vperm.xlu0 %371, %v366
    %v373 = vpop.permute.xlu0 %372
    %374 = vset.pattern.permute.xlu0 0
    %375 = vperm.xlu0 %374, %v368
    %v376 = vpop.permute.xlu0 %375
    %v377 = vlaneseq
    %v378 = vshrl.u32 %v377, 7
    %v379 = vsub.s32 %v336, %v378
    %v380 = vrot.slane %v373, %v379
    %v381 = vlaneseq
    %v382 = vshrl.u32 %v381, 7
    %v383 = vsub.s32 %v336, %v382
    %v384 = vrot.slane %v376, %v383
    %v385 = vsel %vm345, %v384, %v380
    %v387 = vsel %vm348, %v385, 0.0
    %388 = vadd.xlane.f32.xlu0 %v387
    %v389 = vpop.xlane.xlu0 %388
    %v390 = vlog2.pop %v389
    %v391 = vmul.f32 %v390, 0.6931472
    %v393 = vlaneseq
    %v394 = vshrl.u32 %v393, 7
    %v395 = vsub.s32 0, %v394
    %v396 = vrot.slane %v391, %v395
    %v397 = vlaneseq
    %v398 = vshrl.u32 %v397, 7
    %v399 = vsub.s32 1, %v398
    %v400 = vrot.slane %v391, %v399
    %v403 = vsub.f32 %v363, %v396
    %v404 = vsub.f32 %v364, %v400
    %407 = vset.pattern.permute.xlu0 0
    %408 = vperm.xlu0 %407, %v403
    %v409 = vpop.permute.xlu0 %408
    %410 = vset.pattern.permute.xlu0 0
    %411 = vperm.xlu0 %410, %v404
    %v412 = vpop.permute.xlu0 %411
    %v413 = vlaneseq
    %v414 = vshrl.u32 %v413, 7
    %v415 = vsub.s32 %v336, %v414
    %v416 = vrot.slane %v409, %v415
    %v417 = vlaneseq
    %v418 = vshrl.u32 %v417, 7
    %v419 = vsub.s32 %v336, %v418
    %v420 = vrot.slane %v412, %v419
    %v421 = vsel %vm345, %v420, %v416
    %423 = vst.msk [vmem:[#allocation10] sm:$0x3] %vm348, %v421
    // Predicated region
    $region42: #{tpu_custom_call.1} parent=1 // pred_check
      _
    $region43: #{tpu_custom_call.1} parent=1 // pred_check_branch
      %425 = sbr.rel (0) target = $region45
    $region44: #{tpu_custom_call.1} parent=1 // pred_region
      %s427 = ssub.s32 32, 32
      %428 = vsyncadd [#allocation4], %s427
      %s430 = sshll.u32 [#allocation10], 4
      %s431 = int_to_ptr.vmem [resolvable:$true] %s430
      %433 = dma.vmem_to_hbm [thread:$0]  %s431, 32, %s6, [#allocation4]
    $region45: #{tpu_custom_call.1} parent=1 // pred_fallthru
      _
    // Predicated region
    $region46: #{tpu_custom_call.1} parent=1 // pred_check
      _
    $region47: #{tpu_custom_call.1} parent=1 // pred_check_branch
      %435 = sbr.rel (0) target = $region49
    $region48: #{tpu_custom_call.1} parent=1 // pred_region
      %436 = dma.done [#allocation4], 32
    $region49: #{tpu_custom_call.1} parent=1 // pred_fallthru
      _
    %437 = vsyncpa [#allocation3], 1
    %438 = vsyncpa [#allocation6], 1
    %439 = vsyncpa [#allocation9], 1
    %440 = vsyncpa [#allocation4], 1

</llo_original>
